<compile_context>
chip_gen: v7x
topology: tpu7x:2x2x1
jax: 0.10.0
libtpu: 0.0.40
codegen_flags: <defaults>
</compile_context>

<pallas_src>
import functools

import jax
import jax.numpy as jnp
from jax.experimental import pallas as pl
from jax.experimental.pallas import tpu as pltpu


def _layernorm_kernel(x_ref, w_ref, b_ref, o_ref, *, eps, inv_hidden):
    # x_ref: (row_tile, hidden_p) tile in VMEM.  Compute in f32, store in o_ref.dtype.
    x = x_ref[...].astype(jnp.float32)
    # One-pass statistics: a single read of the tile feeds both reductions,
    # no materialized `centered` tile, no second mean-dependent reduction.
    s1 = jnp.sum(x, axis=-1, keepdims=True)
    s2 = jnp.sum(x * x, axis=-1, keepdims=True)
    mean = s1 * inv_hidden
    # E[x^2] - mean^2 can cancel slightly below zero in f32: clamp it.
    var = jnp.maximum(s2 * inv_hidden - mean * mean, 0.0)
    inv = jax.lax.rsqrt(var + eps)       # EUP op: off the VALU critical path
    w = w_ref[...]                        # (1, hidden_p) f32, resident across grid
    b = b_ref[...]                        # (1, hidden_p) f32, resident across grid
    o_ref[...] = (((x - mean) * inv) * w + b).astype(o_ref.dtype)


def _round_up(x, m):
    return (x + m - 1) // m * m


def _round_down_clamped(x, m):
    return max(m, (x // m) * m)


def _vmem_limit_bytes():
    # Physical VMEM: 128 MiB on v5e/v6e, 64 MiB per TensorCore on v7x.
    # Use 3/4 of physical, capped at 96 MiB: -> ~96 MiB on v5e/v6e (helps wide
    # hidden sizes), ~48 MiB on v7x, without hard-coding chip names.
    try:
        cap = pltpu.get_tpu_info().vmem_capacity_bytes
    except Exception:  # interpret mode / older runtimes: assume the smallest chip
        cap = 64 << 20
    return int(min(cap * 3 // 4, 96 << 20))


def _pick_row_tile(rows, hidden_p, dtype, vmem_limit):
    dtype_bytes = jnp.dtype(dtype).itemsize
    # Native sublane granule: 8 rows for 32-bit, 16 for 16-bit packed dtypes.
    sublane = 16 if dtype_bytes == 2 else 8
    rows_aligned = _round_up(rows, sublane)

    # Per-row VMEM live set after the one-pass rewrite: double-buffered input +
    # output tiles in the I/O dtype plus ~2 f32 tile temps (x_f32 and one
    # elementwise temp).  Keep under 60% of the scoped limit to leave headroom
    # for Mosaic internal scratch (tight on v7x's 64 MiB part).
    per_row = hidden_p * (4 * dtype_bytes + 2 * 4)
    budget = int(vmem_limit * 0.6)
    row_tile = _round_down_clamped(budget // max(per_row, 1), sublane)
    row_tile = min(row_tile, 4096, rows_aligned)

    # Pipelining / megacore: prefer ~8 grid steps (>=3-4 per v7x TensorCore)
    # when there is enough work, but keep per-step HBM traffic >= ~4 MiB so the
    # ~0.35us per-step overhead stays amortized (v5e/v6e).
    if rows_aligned >= 8 * sublane:
        steps_tile = _round_up(pl.cdiv(rows_aligned, 8), sublane)
        io_per_row = 2 * hidden_p * dtype_bytes
        floor_rows = _round_down_clamped((4 << 20) // max(io_per_row, 1), sublane)
        floor_rows = min(floor_rows, row_tile)
        row_tile = max(min(row_tile, steps_tile), floor_rows)
    return row_tile


def bert_layer_norm(x, weight, bias, eps=1e-12):
    """x: [..., hidden]; weight/bias: [hidden].  Matches PyTorch BertLayerNorm."""
    orig_shape = x.shape
    hidden = orig_shape[-1]
    rows = 1
    for d in orig_shape[:-1]:
        rows *= d

    x2 = x.reshape(rows, hidden)
    # Pre-cast params to f32 on the host side so the kernel does no per-step convert.
    w2 = weight.astype(jnp.float32).reshape(1, hidden)
    b2 = bias.astype(jnp.float32).reshape(1, hidden)

    # Lane-dense guard: pad hidden to a multiple of 128 (unmasked vst stores).
    # Standard BERT hidden sizes are already multiples of 128, so this is
    # normally a no-op.  Stats divide by the *true* hidden and padded
    # weight/bias lanes are zero, so real lanes are exact.
    hidden_p = _round_up(hidden, 128)
    if hidden_p != hidden:
        pad = hidden_p - hidden
        x2 = jnp.pad(x2, ((0, 0), (0, pad)))
        w2 = jnp.pad(w2, ((0, 0), (0, pad)))
        b2 = jnp.pad(b2, ((0, 0), (0, pad)))

    vmem_limit = _vmem_limit_bytes()
    row_tile = _pick_row_tile(rows, hidden_p, x.dtype, vmem_limit)

    # No row padding: partial last block's out-of-bounds rows compute garbage
    # but their stores are masked by Pallas and never read back.
    grid = (pl.cdiv(rows, row_tile),)

    kernel = functools.partial(
        _layernorm_kernel, eps=float(eps), inv_hidden=1.0 / float(hidden))

    out = pl.pallas_call(
        kernel,
        out_shape=jax.ShapeDtypeStruct((rows, hidden_p), x.dtype),
        grid_spec=pltpu.PrefetchScalarGridSpec(
            num_scalar_prefetch=0,
            grid=grid,
            in_specs=[
                pl.BlockSpec((row_tile, hidden_p), lambda i: (i, 0)),
                pl.BlockSpec((1, hidden_p), lambda i: (0, 0)),
                pl.BlockSpec((1, hidden_p), lambda i: (0, 0)),
            ],
            out_specs=pl.BlockSpec((row_tile, hidden_p), lambda i: (i, 0)),
        ),
        compiler_params=pltpu.CompilerParams(
            dimension_semantics=("parallel",),
            vmem_limit_bytes=vmem_limit,
        ),
    )(x2, w2, b2)

    if hidden_p != hidden:
        out = out[:, :hidden]
    return out.reshape(orig_shape)


def _reference(x, weight, bias, eps):
    mean = jnp.mean(x, axis=-1, keepdims=True)
    var = jnp.mean((x - mean) ** 2, axis=-1, keepdims=True)
    return weight * ((x - mean) / jnp.sqrt(var + eps)) + bias


if __name__ == "__main__":
    batch, seq, hidden = 2, 8, 32
    key = jax.random.PRNGKey(0)
    x = jax.random.normal(key, (batch, seq, hidden), dtype=jnp.float32)

    # Deterministic parameter init matching nn.Parameter(torch.ones/zeros).
    weight = jnp.ones((hidden,), dtype=jnp.float32)
    bias = jnp.zeros((hidden,), dtype=jnp.float32)

    out = jax.block_until_ready(bert_layer_norm(x, weight, bias, eps=1e-12))
    ref = _reference(x, weight, bias, 1e-12)
    assert jnp.allclose(out, ref, atol=1e-5, rtol=1e-5)

    # Exercise the ragged-row (partial last block) path as well.
    x_odd = jax.random.normal(jax.random.PRNGKey(1), (3, 5, hidden), dtype=jnp.float32)
    out_odd = jax.block_until_ready(bert_layer_norm(x_odd, weight, bias, eps=1e-12))
    ref_odd = _reference(x_odd, weight, bias, 1e-12)
    assert jnp.allclose(out_odd, ref_odd, atol=1e-5, rtol=1e-5)

    print("KERNEL_OK")
</pallas_src>

<mosaic_0001>
module attributes {stable_mosaic.version = 11 : i64} {
  func.func @_layernorm_kernel(%arg0: i32, %arg1: memref<16x128xf32, #tpu.memory_space<vmem>>, %arg2: memref<1x128xf32, #tpu.memory_space<vmem>>, %arg3: memref<1x128xf32, #tpu.memory_space<vmem>>, %arg4: memref<16x128xf32, #tpu.memory_space<vmem>>) attributes {dimension_semantics = [#tpu.dimension_semantics<parallel>], iteration_bounds = array<i64: 1>, scalar_prefetch = 0 : i64, scratch_operands = 0 : i64, tpu.core_type = #tpu.core_type<tc>, window_params = [{transform_indices = @transform_0, window_bounds = array<i64: 16, 128>}, {pipeline_mode = #tpu.pipeline_mode<synchronous>, transform_indices = @transform_1, window_bounds = array<i64: 1, 128>}, {pipeline_mode = #tpu.pipeline_mode<synchronous>, transform_indices = @transform_2, window_bounds = array<i64: 1, 128>}, {transform_indices = @transform_3, window_bounds = array<i64: 16, 128>}]} {
    %c0 = arith.constant 0 : index
    %c0_0 = arith.constant 0 : index
    %0 = vector.load %arg1[%c0, %c0_0] : memref<16x128xf32, #tpu.memory_space<vmem>>, vector<16x128xf32>
    %cst = arith.constant dense<0.000000e+00> : vector<16xf32>
    %1 = vector.multi_reduction <add>, %0, %cst [1] : vector<16x128xf32> to vector<16xf32>
    %2 = vector.shape_cast %1 : vector<16xf32> to vector<16x1xf32>
    %3 = arith.mulf %0, %0 : vector<16x128xf32>
    %cst_1 = arith.constant dense<0.000000e+00> : vector<16xf32>
    %4 = vector.multi_reduction <add>, %3, %cst_1 [1] : vector<16x128xf32> to vector<16xf32>
    %5 = vector.shape_cast %4 : vector<16xf32> to vector<16x1xf32>
    %cst_2 = arith.constant 3.125000e-02 : f32
    %6 = vector.broadcast %cst_2 : f32 to vector<16x1xf32>
    %7 = arith.mulf %2, %6 : vector<16x1xf32>
    %cst_3 = arith.constant 3.125000e-02 : f32
    %8 = vector.broadcast %cst_3 : f32 to vector<16x1xf32>
    %9 = arith.mulf %5, %8 : vector<16x1xf32>
    %10 = arith.mulf %7, %7 : vector<16x1xf32>
    %11 = arith.subf %9, %10 : vector<16x1xf32>
    %cst_4 = arith.constant 0.000000e+00 : f32
    %12 = vector.broadcast %cst_4 : f32 to vector<16x1xf32>
    %13 = arith.maximumf %11, %12 : vector<16x1xf32>
    %cst_5 = arith.constant 9.99999996E-13 : f32
    %14 = vector.broadcast %cst_5 : f32 to vector<16x1xf32>
    %15 = arith.addf %13, %14 : vector<16x1xf32>
    %16 = math.rsqrt %15 : vector<16x1xf32>
    %c0_6 = arith.constant 0 : index
    %c0_7 = arith.constant 0 : index
    %17 = vector.load %arg2[%c0_6, %c0_7] : memref<1x128xf32, #tpu.memory_space<vmem>>, vector<1x128xf32>
    %c0_8 = arith.constant 0 : index
    %c0_9 = arith.constant 0 : index
    %18 = vector.load %arg3[%c0_8, %c0_9] : memref<1x128xf32, #tpu.memory_space<vmem>>, vector<1x128xf32>
    %19 = vector.broadcast %7 : vector<16x1xf32> to vector<16x128xf32>
    %20 = arith.subf %0, %19 : vector<16x128xf32>
    %21 = vector.broadcast %16 : vector<16x1xf32> to vector<16x128xf32>
    %22 = arith.mulf %20, %21 : vector<16x128xf32>
    %23 = vector.broadcast %17 : vector<1x128xf32> to vector<16x128xf32>
    %24 = arith.mulf %22, %23 : vector<16x128xf32>
    %25 = vector.broadcast %18 : vector<1x128xf32> to vector<16x128xf32>
    %26 = arith.addf %24, %25 : vector<16x128xf32>
    %c0_10 = arith.constant 0 : index
    %c0_11 = arith.constant 0 : index
    %27 = vector.load %arg4[%c0_10, %c0_11] : memref<16x128xf32, #tpu.memory_space<vmem>>, vector<16x128xf32>
    tpu.vector_store %arg4[%c0_10, %c0_11], %26 {strides = array<i32>} : memref<16x128xf32, #tpu.memory_space<vmem>>, vector<16x128xf32>,
    return
  }
  func.func @transform_0(%arg0: i32) -> (i32, i32) {
    %c0_i32 = arith.constant 0 : i32
    %c0_i32_0 = arith.constant 0 : i32
    return %arg0, %c0_i32 : i32, i32
  }
  func.func @transform_1(%arg0: i32) -> (i32, i32) {
    %c0_i32 = arith.constant 0 : i32
    %c0_i32_0 = arith.constant 0 : i32
    %c0_i32_1 = arith.constant 0 : i32
    return %c0_i32, %c0_i32_0 : i32, i32
  }
  func.func @transform_2(%arg0: i32) -> (i32, i32) {
    %c0_i32 = arith.constant 0 : i32
    %c0_i32_0 = arith.constant 0 : i32
    %c0_i32_1 = arith.constant 0 : i32
    return %c0_i32, %c0_i32_0 : i32, i32
  }
  func.func @transform_3(%arg0: i32) -> (i32, i32) {
    %c0_i32 = arith.constant 0 : i32
    %c0_i32_0 = arith.constant 0 : i32
    return %arg0, %c0_i32 : i32, i32
  }
}

</mosaic_0001>

<llo_original>
// kernel: tpu_custom_call.1
$region0: #{tpu_custom_call.1}
  #allocation0 [shape = 'u32[]', space=smem, size = 0x4, offset = 0x4, fixed_abs, tag = 'smem constant byte address 0x4 - core index']
  #allocation1 [shape = 'u32[144,128]{1,0:T(1,128)}', space=vmem, size = 0x12000, scoped, tag = 'internal scratch']
  %s0 = inlined_call_operand.hbm [shape: f32[16,128], index: 0, kind: input, shape index: {}]
  %s1 = inlined_call_operand.vmem [shape: f32[1,128], index: 1, kind: input, shape index: {}]
  %s2 = inlined_call_operand.vmem [shape: f32[1,128], index: 2, kind: input, shape index: {}]
  %s3 = inlined_call_operand.hbm [shape: f32[16,128], index: 3, kind: output, shape index: {}]
  %s4 = sld [smem:[#allocation0]]
  $region26: #{tpu_custom_call.1} parent=0
    _
  %s6 = ssub.s32 1, %s4
  %s7 = scalar_select 0, %s6, %s4
  $region1: #{tpu_custom_call.1} parent=0
    #allocation2 [shape = 'u8[8192]{0}', space=vmem, size = 0x2000, scoped, tag = 'input window, operand 0, single buffered']
    #allocation3 [shape = 's32[1]{0}', space=sflag, size = 0x4, scoped, tag = 'scoped memory for tpu_custom_call.1']
    #allocation4 [shape = 's32[1]{0}', space=sflag, size = 0x4, scoped, tag = 'scoped memory for tpu_custom_call.1']
    #allocation5 [shape = 'u8[8192]{0}', space=vmem, size = 0x2000, scoped, tag = 'output window, operand 0, single buffered']
    %8 = vsyncpa [#allocation3], 0
    %9 = vsyncpa [#allocation4], 0
    // Predicated region
    $region2: #{tpu_custom_call.1} parent=1 // pred_check
      _
    $region3: #{tpu_custom_call.1} parent=1 // pred_check_branch
      %11 = sbr.rel (0) target = $region5
    $region4: #{tpu_custom_call.1} parent=1 // pred_region
      %s13 = ssub.s32 256, 256
      %14 = vsyncadd [#allocation3], %s13
      %s15 = sshll.u32 [#allocation2], 4
      %s16 = int_to_ptr.vmem [resolvable:$true] %s15
      %21 = dma.hbm_to_vmem [thread:$0]  %s0, 256, %s16, [#allocation3], 128, 128, 8
    $region5: #{tpu_custom_call.1} parent=1 // pred_fallthru
      _
    // Predicated region
    $region6: #{tpu_custom_call.1} parent=1 // pred_check
      _
    $region7: #{tpu_custom_call.1} parent=1 // pred_check_branch
      %23 = sbr.rel (0) target = $region9
    $region8: #{tpu_custom_call.1} parent=1 // pred_region
      _
    $region9: #{tpu_custom_call.1} parent=1 // pred_fallthru
      _
    // Predicated region
    $region10: #{tpu_custom_call.1} parent=1 // pred_check
      _
    $region11: #{tpu_custom_call.1} parent=1 // pred_check_branch
      %25 = sbr.rel (0) target = $region13
    $region12: #{tpu_custom_call.1} parent=1 // pred_region
      _
    $region13: #{tpu_custom_call.1} parent=1 // pred_fallthru
      _
    // Predicated region
    $region14: #{tpu_custom_call.1} parent=1 // pred_check
      _
    $region15: #{tpu_custom_call.1} parent=1 // pred_check_branch
      %27 = sbr.rel (0) target = $region17
    $region16: #{tpu_custom_call.1} parent=1 // pred_region
      %28 = dma.done [#allocation3], 256
    $region17: #{tpu_custom_call.1} parent=1 // pred_fallthru
      _
    %v29 = vld [vmem:[#allocation2] sm:$0xff]
    %v30 = vld [vmem:[#allocation2 + $0x8] sm:$0xff]
    %31 = vadd.xlane.f32.xlu0 %v29
    %v32 = vpop.xlane.xlu0 %31
    %33 = vadd.xlane.f32.xlu0 %v30
    %v34 = vpop.xlane.xlu0 %33
    %v35 = vmul.f32 %v29, %v29
    %v36 = vmul.f32 %v30, %v30
    %37 = vadd.xlane.f32.xlu0 %v35
    %v38 = vpop.xlane.xlu0 %37
    %39 = vadd.xlane.f32.xlu0 %v36
    %v40 = vpop.xlane.xlu0 %39
    %v41 = vmul.f32 %v32, 0.03125
    %v42 = vmul.f32 %v34, 0.03125
    %v43 = vmul.f32 %v38, 0.03125
    %v44 = vmul.f32 %v40, 0.03125
    %v45 = vmul.f32 %v41, %v41
    %v46 = vmul.f32 %v42, %v42
    %v47 = vsub.f32 %v43, %v45
    %v48 = vsub.f32 %v44, %v46
    %v49 = vmax.f32 %v47, 0.0
    %v50 = vmax.f32 %v48, 0.0
    %v51 = vadd.f32 %v49, 1e-12
    %v52 = vadd.f32 %v50, 1e-12
    %v53 = vrsqrt.pop %v51
    %v54 = vrsqrt.pop %v52
    %v55 = vld [vmem:[%s1] sm:$0x1]
    %v56 = vld [vmem:[%s2] sm:$0x1]
    %v57 = vsub.f32 %v29, %v41
    %v58 = vsub.f32 %v30, %v42
    %v59 = vmul.f32 %v57, %v53
    %v60 = vmul.f32 %v58, %v54
    %v62 = vlaneseq
    %v63 = vshrl.u32 %v62, 7
    %v64 = vsub.s32 0, %v63
    %v65 = vrot.slane %v55, %v64
    %v67 = vmul.f32 %v59, %v65
    %v68 = vmul.f32 %v60, %v65
    %v70 = vlaneseq
    %v71 = vshrl.u32 %v70, 7
    %v72 = vsub.s32 0, %v71
    %v73 = vrot.slane %v56, %v72
    %v75 = vadd.f32 %v67, %v73
    %v76 = vadd.f32 %v68, %v73
    %77 = vst [vmem:[#allocation5] sm:$0xff] %v75
    %78 = vst [vmem:[#allocation5 + $0x8] sm:$0xff] %v76
    // Predicated region
    $region18: #{tpu_custom_call.1} parent=1 // pred_check
      _
    $region19: #{tpu_custom_call.1} parent=1 // pred_check_branch
      %80 = sbr.rel (0) target = $region21
    $region20: #{tpu_custom_call.1} parent=1 // pred_region
      %s82 = ssub.s32 256, 256
      %83 = vsyncadd [#allocation4], %s82
      %s84 = sshll.u32 [#allocation5], 4
      %s85 = int_to_ptr.vmem [resolvable:$true] %s84
      %90 = dma.vmem_to_hbm [thread:$0]  %s85, 256, %s3, [#allocation4], 128, 128, 8
    $region21: #{tpu_custom_call.1} parent=1 // pred_fallthru
      _
    // Predicated region
    $region22: #{tpu_custom_call.1} parent=1 // pred_check
      _
    $region23: #{tpu_custom_call.1} parent=1 // pred_check_branch
      %92 = sbr.rel (0) target = $region25
    $region24: #{tpu_custom_call.1} parent=1 // pred_region
      %93 = dma.done [#allocation4], 256
    $region25: #{tpu_custom_call.1} parent=1 // pred_fallthru
      _
    %94 = vsyncpa [#allocation3], 1
    %95 = vsyncpa [#allocation4], 1

</llo_original>
